<compile_context>
chip_gen: v6e
topology: v6e:2x2x1
jax: 0.10.0
libtpu: 0.0.40
codegen_flags: <defaults>
</compile_context>

<pallas_src>
import jax
import jax.numpy as jnp
import numpy as np
from jax.experimental import pallas as pl
from jax.experimental.pallas import tpu as pltpu


def decoder_kernel(growth_ref, damp_ref, w_ref, bias_ref, *rest):
    """One grid step = (time-tile t, batch b). Everything statically indexed.

    growth_ref : (1, L, D)    last-timestep growth per layer for batch b
    damp_ref   : (L, TQ, D)   cumulative damping rows for time-tile t
    w_ref      : (D, Cp)      prediction weight (lane-padded), resident
    bias_ref   : (1, Cp)      bias (lane-padded), resident
    rest       : L season refs, each (1, TQ, D), then out_g_ref, out_s_ref
                 each (1, TQ, Cp)
    """
    num_layers = len(rest) - 2
    season_refs = rest[:num_layers]
    out_g_ref, out_s_ref = rest[num_layers], rest[num_layers + 1]

    tq, d = season_refs[0].shape[1], season_refs[0].shape[2]

    g_all = growth_ref[0]          # (L, D) -- tiny, load once
    w = w_ref[...]                 # (D, Cp)
    bias = bias_ref[...]           # (1, Cp)

    # D-space accumulation over the (static) layer loop; no concats, no RMW.
    g_acc = jnp.zeros((tq, d), jnp.float32)
    s_acc = jnp.zeros((tq, d), jnp.float32)
    for l in range(num_layers):
        gl = g_all[l:l + 1, :]             # (1, D) static slice
        dmp = damp_ref[l]                  # (TQ, D) static index
        g_acc = g_acc + gl * dmp           # broadcast over time rows
        s_acc = s_acc + season_refs[l][0]  # (TQ, D)

    # Single projection per tile per stream; stores are unmasked (Cp = 128k).
    yg = jnp.dot(g_acc, w, preferred_element_type=jnp.float32) + bias
    ys = jnp.dot(s_acc, w, preferred_element_type=jnp.float32) + bias
    out_g_ref[...] = yg[None]
    out_s_ref[...] = ys[None]


def cumulative_damping(damp_param, pred_len, d_model, nhead):
    """damp_param: (1, nhead). Returns (pred_len, d_model) per-feature factors."""
    df = jax.nn.sigmoid(damp_param)                                   # (1, nhead)
    powers = jnp.arange(1, pred_len + 1, dtype=jnp.float32).reshape(pred_len, 1)
    d = jnp.cumsum(df ** powers, axis=0)                              # (Tp, nhead)
    # Contiguous per-head feature blocks == torch view(b,t,nhead,-1) broadcast.
    return jnp.repeat(d, d_model // nhead, axis=1)                    # (Tp, D)


def _choose_row_tile(tp_pad, row_bytes, vmem_budget=24 * 2 ** 20, max_rows=1024):
    """Largest multiple-of-8 divisor of tp_pad with TQ*row_bytes under budget."""
    best = 8
    for cand in range(8, min(tp_pad, max_rows) + 1, 8):
        if tp_pad % cand == 0 and cand * row_bytes <= vmem_budget:
            best = cand
    return best


def decoder_forward(growths, seasons, damp_params, w_pred, b_pred,
                    pred_len, nhead):
    """growths/seasons: lists of (B, T_in, D). w_pred: (c_out, D) like nn.Linear."""
    L = len(growths)
    B, T_in, D = growths[0].shape
    C = w_pred.shape[0]
    Cp = ((C + 127) // 128) * 128           # lane-pad c_out -> unmasked stores
    Tp = pred_len
    Tp_pad = ((Tp + 7) // 8) * 8            # sublane-pad the horizon

    # Per-time-row VMEM bytes that scale with TQ: L season inputs + damp rows
    # (double-buffered), two outputs (double-buffered), two f32 accumulators.
    row_bytes = (2 * L * D + 2 * L * D + 2 * 2 * Cp + 2 * D) * 4
    TQ = _choose_row_tile(Tp_pad, row_bytes)
    n_tq = Tp_pad // TQ

    off = T_in - Tp
    if off >= 0 and off % TQ == 0:
        # Fast path: read season tails directly from the original arrays.
        season_in = list(seasons)
        off_blk = off // TQ
    else:
        # TODO(synk): misaligned tail offset -> one restaging pass over tails.
        season_in = [s[:, T_in - Tp:, :] for s in seasons]
        off_blk = 0

    # Tiny host-side precompute (KBs): last-step growth and cumulative damping.
    growth_last = jnp.stack([g[:, -1, :] for g in growths], axis=1)   # (B, L, D)
    damp = jnp.stack(
        [cumulative_damping(p, Tp, D, nhead) for p in damp_params])   # (L, Tp, D)
    damp_full = jnp.zeros((L, Tp_pad, D), jnp.float32).at[:, :Tp, :].set(damp)

    W_pad = jnp.zeros((D, Cp), jnp.float32).at[:, :C].set(w_pred.T)   # (D, Cp)
    bias_pad = jnp.zeros((1, Cp), jnp.float32).at[0, :C].set(b_pred)  # (1, Cp)

    in_specs = [
        pl.BlockSpec((1, L, D), lambda t, b: (b, 0, 0)),       # growth_last
        pl.BlockSpec((L, TQ, D), lambda t, b: (0, t, 0)),      # damp (t-only)
        pl.BlockSpec((D, Cp), lambda t, b: (0, 0)),            # W, resident
        pl.BlockSpec((1, Cp), lambda t, b: (0, 0)),            # bias, resident
    ] + [
        pl.BlockSpec((1, TQ, D), lambda t, b, _o=off_blk: (b, _o + t, 0))
        for _ in range(L)                                      # season tails
    ]
    out_specs = (
        pl.BlockSpec((1, TQ, Cp), lambda t, b: (b, t, 0)),
        pl.BlockSpec((1, TQ, Cp), lambda t, b: (b, t, 0)),
    )

    out_g, out_s = pl.pallas_call(
        decoder_kernel,
        out_shape=(jax.ShapeDtypeStruct((B, Tp_pad, Cp), jnp.float32),
                   jax.ShapeDtypeStruct((B, Tp_pad, Cp), jnp.float32)),
        grid_spec=pltpu.PrefetchScalarGridSpec(
            num_scalar_prefetch=0,
            grid=(n_tq, B),                 # both axes independent
            in_specs=in_specs,
            out_specs=out_specs,
        ),
        compiler_params=pltpu.CompilerParams(
            dimension_semantics=("parallel", "parallel"),   # v7x 2-TC sharding
            vmem_limit_bytes=48 * 1024 * 1024,              # < v7x 64 MiB phys
        ),
    )(growth_last, damp_full, W_pad, bias_pad, *season_in)

    return out_g[:, :Tp, :C], out_s[:, :Tp, :C]


def decoder_reference(growths, seasons, damp_params, w_pred, b_pred,
                      pred_len, nhead):
    """Pure-JAX reference mirroring the PyTorch forward (eval mode)."""
    D = growths[0].shape[-1]
    growth_repr = 0.0
    season_repr = 0.0
    for g, s, p in zip(growths, seasons, damp_params):
        damp = cumulative_damping(p, pred_len, D, nhead)          # (Tp, D)
        growth_repr = growth_repr + g[:, -1:, :] * damp[None]     # (B, Tp, D)
        season_repr = season_repr + s[:, -pred_len:, :]
    pred = lambda x: x @ w_pred.T + b_pred
    return pred(growth_repr), pred(season_repr)


if __name__ == "__main__":
    # Small shapes consistent with the module.
    B, T_in, D, nhead, c_out, pred_len, n_layers = 2, 16, 32, 4, 4, 8, 2

    key = jax.random.PRNGKey(0)
    keys = jax.random.split(key, 3 * n_layers + 2)

    growths = [jax.random.normal(keys[i], (B, T_in, D), jnp.float32)
               for i in range(n_layers)]
    seasons = [jax.random.normal(keys[n_layers + i], (B, T_in, D), jnp.float32)
               for i in range(n_layers)]
    # DampingLayer._damping_factor ~ randn(1, nhead) per layer.
    damp_params = [jax.random.normal(keys[2 * n_layers + i], (1, nhead), jnp.float32)
                   for i in range(n_layers)]
    # nn.Linear(d_model, c_out): weight (c_out, d_model), bias (c_out,).
    lim = 1.0 / np.sqrt(D)
    w_pred = jax.random.uniform(keys[-2], (c_out, D), jnp.float32, -lim, lim)
    b_pred = jax.random.uniform(keys[-1], (c_out,), jnp.float32, -lim, lim)

    out_g, out_s = decoder_forward(growths, seasons, damp_params, w_pred, b_pred,
                                   pred_len, nhead)
    jax.block_until_ready((out_g, out_s))

    ref_g, ref_s = decoder_reference(growths, seasons, damp_params, w_pred, b_pred,
                                     pred_len, nhead)
    np.testing.assert_allclose(np.asarray(out_g), np.asarray(ref_g),
                               rtol=1e-5, atol=1e-5)
    np.testing.assert_allclose(np.asarray(out_s), np.asarray(ref_s),
                               rtol=1e-5, atol=1e-5)

    print("KERNEL_OK")
</pallas_src>

<mosaic_0001>
module attributes {stable_mosaic.version = 11 : i64} {
  func.func @decoder_kernel(%arg0: i32, %arg1: i32, %arg2: memref<1x2x32xf32, #tpu.memory_space<vmem>>, %arg3: memref<2x8x32xf32, #tpu.memory_space<vmem>>, %arg4: memref<32x128xf32, #tpu.memory_space<vmem>>, %arg5: memref<1x128xf32, #tpu.memory_space<vmem>>, %arg6: memref<1x8x32xf32, #tpu.memory_space<vmem>>, %arg7: memref<1x8x32xf32, #tpu.memory_space<vmem>>, %arg8: memref<1x8x128xf32, #tpu.memory_space<vmem>>, %arg9: memref<1x8x128xf32, #tpu.memory_space<vmem>>) attributes {dimension_semantics = [#tpu.dimension_semantics<parallel>, #tpu.dimension_semantics<parallel>], iteration_bounds = array<i64: 1, 2>, scalar_prefetch = 0 : i64, scratch_operands = 0 : i64, tpu.core_type = #tpu.core_type<tc>, window_params = [{transform_indices = @transform_0, window_bounds = array<i64: 1, 2, 32>}, {transform_indices = @transform_1, window_bounds = array<i64: 2, 8, 32>}, {pipeline_mode = #tpu.pipeline_mode<synchronous>, transform_indices = @transform_2, window_bounds = array<i64: 32, 128>}, {pipeline_mode = #tpu.pipeline_mode<synchronous>, transform_indices = @transform_3, window_bounds = array<i64: 1, 128>}, {transform_indices = @transform_4, window_bounds = array<i64: 1, 8, 32>}, {transform_indices = @transform_5, window_bounds = array<i64: 1, 8, 32>}, {transform_indices = @transform_6, window_bounds = array<i64: 1, 8, 128>}, {transform_indices = @transform_7, window_bounds = array<i64: 1, 8, 128>}]} {
    %c0 = arith.constant 0 : index
    %c0_0 = arith.constant 0 : index
    %c0_1 = arith.constant 0 : index
    %0 = vector.load %arg2[%c0, %c0_0, %c0_1] : memref<1x2x32xf32, #tpu.memory_space<vmem>>, vector<1x2x32xf32>
    %1 = vector.shape_cast %0 : vector<1x2x32xf32> to vector<2x32xf32>
    %c0_2 = arith.constant 0 : index
    %c0_3 = arith.constant 0 : index
    %2 = vector.load %arg4[%c0_2, %c0_3] : memref<32x128xf32, #tpu.memory_space<vmem>>, vector<32x128xf32>
    %c0_4 = arith.constant 0 : index
    %c0_5 = arith.constant 0 : index
    %3 = vector.load %arg5[%c0_4, %c0_5] : memref<1x128xf32, #tpu.memory_space<vmem>>, vector<1x128xf32>
    %cst = arith.constant 0.000000e+00 : f32
    %4 = vector.broadcast %cst : f32 to vector<8x32xf32>
    %cst_6 = arith.constant 0.000000e+00 : f32
    %5 = vector.broadcast %cst_6 : f32 to vector<8x32xf32>
    %6 = vector.extract_strided_slice %1 {offsets = [0, 0], sizes = [1, 32], strides = [1, 1]} : vector<2x32xf32> to vector<1x32xf32>
    %c0_7 = arith.constant 0 : index
    %c0_8 = arith.constant 0 : index
    %c0_9 = arith.constant 0 : index
    %7 = vector.load %arg3[%c0_7, %c0_8, %c0_9] : memref<2x8x32xf32, #tpu.memory_space<vmem>>, vector<1x8x32xf32>
    %8 = vector.shape_cast %7 : vector<1x8x32xf32> to vector<8x32xf32>
    %9 = vector.broadcast %6 : vector<1x32xf32> to vector<8x32xf32>
    %10 = arith.mulf %9, %8 : vector<8x32xf32>
    %11 = arith.addf %4, %10 : vector<8x32xf32>
    %c0_10 = arith.constant 0 : index
    %c0_11 = arith.constant 0 : index
    %c0_12 = arith.constant 0 : index
    %12 = vector.load %arg6[%c0_10, %c0_11, %c0_12] : memref<1x8x32xf32, #tpu.memory_space<vmem>>, vector<1x8x32xf32>
    %13 = vector.shape_cast %12 : vector<1x8x32xf32> to vector<8x32xf32>
    %14 = arith.addf %5, %13 : vector<8x32xf32>
    %15 = vector.extract_strided_slice %1 {offsets = [1, 0], sizes = [1, 32], strides = [1, 1]} : vector<2x32xf32> to vector<1x32xf32>
    %c1 = arith.constant 1 : index
    %c0_13 = arith.constant 0 : index
    %c0_14 = arith.constant 0 : index
    %16 = vector.load %arg3[%c1, %c0_13, %c0_14] : memref<2x8x32xf32, #tpu.memory_space<vmem>>, vector<1x8x32xf32>
    %17 = vector.shape_cast %16 : vector<1x8x32xf32> to vector<8x32xf32>
    %18 = vector.broadcast %15 : vector<1x32xf32> to vector<8x32xf32>
    %19 = arith.mulf %18, %17 : vector<8x32xf32>
    %20 = arith.addf %11, %19 : vector<8x32xf32>
    %c0_15 = arith.constant 0 : index
    %c0_16 = arith.constant 0 : index
    %c0_17 = arith.constant 0 : index
    %21 = vector.load %arg7[%c0_15, %c0_16, %c0_17] : memref<1x8x32xf32, #tpu.memory_space<vmem>>, vector<1x8x32xf32>
    %22 = vector.shape_cast %21 : vector<1x8x32xf32> to vector<8x32xf32>
    %23 = arith.addf %14, %22 : vector<8x32xf32>
    %cst_18 = arith.constant dense<0.000000e+00> : vector<8x128xf32>
    %24 = tpu.matmul %20, %2, %cst_18 {dimension_numbers = #tpu.dot_dimension_numbers<[1], [0], [0], [1], [0, 0, 1, 1], [], []>} : vector<8x32xf32>, vector<32x128xf32>, vector<8x128xf32> -> vector<8x128xf32>
    %25 = vector.broadcast %3 : vector<1x128xf32> to vector<8x128xf32>
    %26 = arith.addf %24, %25 : vector<8x128xf32>
    %cst_19 = arith.constant dense<0.000000e+00> : vector<8x128xf32>
    %27 = tpu.matmul %23, %2, %cst_19 {dimension_numbers = #tpu.dot_dimension_numbers<[1], [0], [0], [1], [0, 0, 1, 1], [], []>} : vector<8x32xf32>, vector<32x128xf32>, vector<8x128xf32> -> vector<8x128xf32>
    %28 = vector.broadcast %3 : vector<1x128xf32> to vector<8x128xf32>
    %29 = arith.addf %27, %28 : vector<8x128xf32>
    %30 = vector.shape_cast %26 : vector<8x128xf32> to vector<1x8x128xf32>
    %c0_20 = arith.constant 0 : index
    %c0_21 = arith.constant 0 : index
    %c0_22 = arith.constant 0 : index
    %31 = vector.load %arg8[%c0_20, %c0_21, %c0_22] : memref<1x8x128xf32, #tpu.memory_space<vmem>>, vector<1x8x128xf32>
    tpu.vector_store %arg8[%c0_20, %c0_21, %c0_22], %30 {strides = array<i32>} : memref<1x8x128xf32, #tpu.memory_space<vmem>>, vector<1x8x128xf32>,
    %32 = vector.shape_cast %29 : vector<8x128xf32> to vector<1x8x128xf32>
    %c0_23 = arith.constant 0 : index
    %c0_24 = arith.constant 0 : index
    %c0_25 = arith.constant 0 : index
    %33 = vector.load %arg9[%c0_23, %c0_24, %c0_25] : memref<1x8x128xf32, #tpu.memory_space<vmem>>, vector<1x8x128xf32>
    tpu.vector_store %arg9[%c0_23, %c0_24, %c0_25], %32 {strides = array<i32>} : memref<1x8x128xf32, #tpu.memory_space<vmem>>, vector<1x8x128xf32>,
    return
  }
  func.func @transform_0(%arg0: i32, %arg1: i32) -> (i32, i32, i32) {
    %c0_i32 = arith.constant 0 : i32
    %c0_i32_0 = arith.constant 0 : i32
    %c0_i32_1 = arith.constant 0 : i32
    return %arg1, %c0_i32, %c0_i32_0 : i32, i32, i32
  }
  func.func @transform_1(%arg0: i32, %arg1: i32) -> (i32, i32, i32) {
    %c0_i32 = arith.constant 0 : i32
    %c0_i32_0 = arith.constant 0 : i32
    %c0_i32_1 = arith.constant 0 : i32
    return %c0_i32, %arg0, %c0_i32_0 : i32, i32, i32
  }
  func.func @transform_2(%arg0: i32, %arg1: i32) -> (i32, i32) {
    %c0_i32 = arith.constant 0 : i32
    %c0_i32_0 = arith.constant 0 : i32
    %c0_i32_1 = arith.constant 0 : i32
    return %c0_i32, %c0_i32_0 : i32, i32
  }
  func.func @transform_3(%arg0: i32, %arg1: i32) -> (i32, i32) {
    %c0_i32 = arith.constant 0 : i32
    %c0_i32_0 = arith.constant 0 : i32
    %c0_i32_1 = arith.constant 0 : i32
    return %c0_i32, %c0_i32_0 : i32, i32
  }
  func.func @transform_4(%arg0: i32, %arg1: i32) -> (i32, i32, i32) {
    %c1_i32 = arith.constant 1 : i32
    %0 = arith.addi %c1_i32, %arg0 : i32
    %c0_i32 = arith.constant 0 : i32
    %c0_i32_0 = arith.constant 0 : i32
    return %arg1, %0, %c0_i32 : i32, i32, i32
  }
  func.func @transform_5(%arg0: i32, %arg1: i32) -> (i32, i32, i32) {
    %c1_i32 = arith.constant 1 : i32
    %0 = arith.addi %c1_i32, %arg0 : i32
    %c0_i32 = arith.constant 0 : i32
    %c0_i32_0 = arith.constant 0 : i32
    return %arg1, %0, %c0_i32 : i32, i32, i32
  }
  func.func @transform_6(%arg0: i32, %arg1: i32) -> (i32, i32, i32) {
    %c0_i32 = arith.constant 0 : i32
    %c0_i32_0 = arith.constant 0 : i32
    return %arg1, %arg0, %c0_i32 : i32, i32, i32
  }
  func.func @transform_7(%arg0: i32, %arg1: i32) -> (i32, i32, i32) {
    %c0_i32 = arith.constant 0 : i32
    %c0_i32_0 = arith.constant 0 : i32
    return %arg1, %arg0, %c0_i32 : i32, i32, i32
  }
}

</mosaic_0001>

<llo_original>
// kernel: tpu_custom_call.1
$region0: #{tpu_custom_call.1}
  #allocation0 [shape = 'u32[]', space=smem, size = 0x4, offset = 0x4, fixed_abs, tag = 'smem constant byte address 0x4 - core index']
  #allocation1 [shape = 'u32[144,128]{1,0:T(1,128)}', space=vmem, size = 0x12000, scoped, tag = 'internal scratch']
  %s0 = inlined_call_operand.hbm [shape: f32[2,2,32], index: 0, kind: input, shape index: {}]
  %s1 = inlined_call_operand.hbm [shape: f32[2,8,32], index: 1, kind: input, shape index: {}]
  %s2 = inlined_call_operand.hbm [shape: f32[32,128], index: 2, kind: input, shape index: {}]
  %s3 = inlined_call_operand.vmem [shape: f32[1,128], index: 3, kind: input, shape index: {}]
  %s4 = inlined_call_operand.hbm [shape: f32[2,16,32], index: 4, kind: input, shape index: {}]
  %s5 = inlined_call_operand.hbm [shape: f32[2,16,32], index: 5, kind: input, shape index: {}]
  %s6 = inlined_call_operand.hbm [shape: f32[2,8,128], index: 6, kind: output, shape index: {0}]
  %s7 = inlined_call_operand.hbm [shape: f32[2,8,128], index: 7, kind: output, shape index: {1}]
  %8 = xla_tuple %s6, %s7
  %s9 = sld [smem:[#allocation0]]
  $region85: #{tpu_custom_call.1} parent=0
    _
  %s11 = ssub.s32 1, %s9
  %s12 = scalar_select 0, %s11, %s9
  $region1: #{tpu_custom_call.1} parent=0
    #allocation2 [shape = 'u8[2048]{0}', space=vmem, size = 0x800, scoped, tag = 'input window, operand 0']
    #allocation3 [shape = 's32[2]{0}', space=sflag, size = 0x8, scoped, tag = 'scoped memory for tpu_custom_call.1']
    #allocation4 [shape = 's32[2]{0}', space=sflag, size = 0x8, scoped, tag = 'scoped memory for tpu_custom_call.1']
    #allocation5 [shape = 'u8[8192]{0}', space=vmem, size = 0x2000, scoped, tag = 'input window, operand 1, single buffered']
    #allocation6 [shape = 's32[1]{0}', space=sflag, size = 0x4, scoped, tag = 'scoped memory for tpu_custom_call.1']
    #allocation7 [shape = 'u8[16384]{0}', space=vmem, size = 0x4000, scoped, tag = 'input window, operand 2, single buffered']
    #allocation8 [shape = 'u8[8192]{0}', space=vmem, size = 0x2000, scoped, tag = 'input window, operand 4']
    #allocation9 [shape = 's32[2]{0}', space=sflag, size = 0x8, scoped, tag = 'scoped memory for tpu_custom_call.1']
    #allocation10 [shape = 'u8[8192]{0}', space=vmem, size = 0x2000, scoped, tag = 'input window, operand 5']
    #allocation11 [shape = 'u8[8192]{0}', space=vmem, size = 0x2000, scoped, tag = 'output window, operand 0']
    #allocation12 [shape = 'u8[8192]{0}', space=vmem, size = 0x2000, scoped, tag = 'output window, operand 1']
    #allocation13 [shape = 's32[2]{0}', space=sflag, size = 0x8, scoped, tag = 'scoped memory for tpu_custom_call.1']
    %13 = vsyncpa [#allocation3], 0
    %s14 = scalar_lea.sflag [#allocation3], 1
    %15 = vsyncpa %s14, 0
    %16 = vsyncpa [#allocation6], 0
    %17 = vsyncpa [#allocation9], 0
    %s18 = scalar_lea.sflag [#allocation9], 1
    %19 = vsyncpa %s18, 0
    %20 = vsyncpa [#allocation4], 0
    %s21 = scalar_lea.sflag [#allocation4], 1
    %22 = vsyncpa %s21, 0
    %23 = vsyncpa [#allocation13], 0
    %s24 = scalar_lea.sflag [#allocation13], 1
    %25 = vsyncpa %s24, 0
    loop: start=0, step=1, limit=4
    $region2: #{tpu_custom_call.1} parent=1 // loop_pre_header
      _
    $region3: #{tpu_custom_call.1} parent=1 // loop_header
      %s27 = sphi 0, %s31
      %p28 = scmp.ge.s32.totalorder %s27, 4
      %s34 = sphi 0, %s46
      %s35 = sphi 0, %s42
      %s36 = sphi 0, %s34
      %s37 = sphi 0, %s35
      %s38 = sphi 0, %s36
      %s39 = sphi 0, %s37
      %s49 = sphi 0, %s51
      %s52 = sphi 0, %s49
      %s53 = sphi 0, %s52
      %s69 = sphi 0, %s53
      %s75 = sphi 0, %s77
      %s78 = sphi 0, %s75
      %s79 = sphi 0, %s78
      %s95 = sphi 0, %s79
      %s99 = sphi 0, %s99
      %s101 = sphi 0, %s99
      %s102 = sphi 0, %s101
      %s116 = sphi 0, %s102
      %s120 = sphi 0, %s120
      %s122 = sphi 0, %s120
      %s123 = sphi 0, %s122
      %s137 = sphi 0, %s123
      %s147 = sphi 0, %s149
      %s150 = sphi 0, %s147
      %s151 = sphi 0, %s150
      %s167 = sphi 0, %s151
      %s177 = sphi 0, %s179
      %s180 = sphi 0, %s177
      %s181 = sphi 0, %s180
      %s197 = sphi 0, %s181
      %s205 = sphi 0, %s207
      %s208 = sphi 0, %s205
      %s209 = sphi 0, %s208
      %s225 = sphi 0, %s209
      %s233 = sphi 0, %s235
      %s236 = sphi 0, %s233
      %s237 = sphi 0, %s236
      %s253 = sphi 0, %s237
    $region4: #{tpu_custom_call.1} parent=1 // loop_header_branch
      %30 = sbr.rel (%p28) target = $region8
    $region5: #{tpu_custom_call.1} parent=1 // loop_body
      %s32 = ssub.s32 %s27, 1
      %s33 = ssub.s32 %s27, 2
      %s40 = sadd.s32 1, %s35
      %p41 = scmp.ge.s32.totalorder %s40, 2
      %s42 = scalar_select %p41, 0, %s40
      %s43 = sadd.s32 1, %s34
      %s44 = scalar_select %p41, %s43, %s34
      %p45 = scmp.ge.s32.totalorder %s44, 1
      %s46 = scalar_select %p45, 0, %s44
      %s47 = ssub.s32 %s35, %s42
      %p48 = scmp.eq.s32.totalorder %s47, 0
      %s50 = sadd.s32 %s49, 1
      %s51 = scalar_select %p48, %s49, %s50
      %p54 = pneg %p48
      %p55 = scmp.eq.s32.totalorder %s27, 1
      %p56 = por %p54, %p55
      %p57 = scmp.ne.s32.totalorder %s49, %s52
      %p58 = scmp.eq.s32.totalorder %s27, 0
      %p59 = por %p57, %p58
      %p60 = scmp.ne.s32.totalorder %s49, %s52
      %p61 = scmp.eq.s32.totalorder %s32, 1
      %p62 = por %p60, %p61
      %p63 = scmp.ne.s32.totalorder %s52, %s53
      %p64 = scmp.eq.s32.totalorder %s32, 0
      %p65 = por %p63, %p64
      %p66 = scmp.ne.s32.totalorder %s52, %s53
      %p67 = scmp.eq.s32.totalorder %s33, 1
      %p68 = por %p66, %p67
      %p70 = scmp.ne.s32.totalorder %s53, %s69
      %p71 = scmp.eq.s32.totalorder %s33, 0
      %p72 = por %p70, %p71
      %s73 = ssub.s32 %s34, %s46
      %p74 = scmp.eq.s32.totalorder %s73, 0
      %s76 = sadd.s32 %s75, 1
      %s77 = scalar_select %p74, %s75, %s76
      %p80 = pneg %p74
      %p81 = scmp.eq.s32.totalorder %s27, 1
      %p82 = por %p80, %p81
      %p83 = scmp.ne.s32.totalorder %s75, %s78
      %p84 = scmp.eq.s32.totalorder %s27, 0
      %p85 = por %p83, %p84
      %p86 = scmp.ne.s32.totalorder %s75, %s78
      %p87 = scmp.eq.s32.totalorder %s32, 1
      %p88 = por %p86, %p87
      %p89 = scmp.ne.s32.totalorder %s78, %s79
      %p90 = scmp.eq.s32.totalorder %s32, 0
      %p91 = por %p89, %p90
      %p92 = scmp.ne.s32.totalorder %s78, %s79
      %p93 = scmp.eq.s32.totalorder %s33, 1
      %p94 = por %p92, %p93
      %p96 = scmp.ne.s32.totalorder %s79, %s95
      %p97 = scmp.eq.s32.totalorder %s33, 0
      %p98 = por %p96, %p97
      %s100 = sadd.s32 %s99, 1
      %p103 = scmp.eq.s32.totalorder %s27, 1
      %p104 = scmp.ne.s32.totalorder %s99, %s101
      %p105 = scmp.eq.s32.totalorder %s27, 0
      %p106 = por %p104, %p105
      %p107 = scmp.ne.s32.totalorder %s99, %s101
      %p108 = scmp.eq.s32.totalorder %s32, 1
      %p109 = por %p107, %p108
      %p110 = scmp.ne.s32.totalorder %s101, %s102
      %p111 = scmp.eq.s32.totalorder %s32, 0
      %p112 = por %p110, %p111
      %p113 = scmp.ne.s32.totalorder %s101, %s102
      %p114 = scmp.eq.s32.totalorder %s33, 1
      %p115 = por %p113, %p114
      %p117 = scmp.ne.s32.totalorder %s102, %s116
      %p118 = scmp.eq.s32.totalorder %s33, 0
      %p119 = por %p117, %p118
      %s121 = sadd.s32 %s120, 1
      %p124 = scmp.eq.s32.totalorder %s27, 1
      %p125 = scmp.ne.s32.totalorder %s120, %s122
      %p126 = scmp.eq.s32.totalorder %s27, 0
      %p127 = por %p125, %p126
      %p128 = scmp.ne.s32.totalorder %s120, %s122
      %p129 = scmp.eq.s32.totalorder %s32, 1
      %p130 = por %p128, %p129
      %p131 = scmp.ne.s32.totalorder %s122, %s123
      %p132 = scmp.eq.s32.totalorder %s32, 0
      %p133 = por %p131, %p132
      %p134 = scmp.ne.s32.totalorder %s122, %s123
      %p135 = scmp.eq.s32.totalorder %s33, 1
      %p136 = por %p134, %p135
      %p138 = scmp.ne.s32.totalorder %s123, %s137
      %p139 = scmp.eq.s32.totalorder %s33, 0
      %p140 = por %p138, %p139
      %s141 = sadd.s32 %s34, 1
      %s142 = sadd.s32 %s46, 1
      %s143 = ssub.s32 %s35, %s42
      %s144 = ssub.s32 %s141, %s142
      %s145 = sor.u32 %s143, %s144
      %p146 = scmp.eq.s32.totalorder %s145, 0
      %s148 = sadd.s32 %s147, 1
      %s149 = scalar_select %p146, %s147, %s148
      %p152 = pneg %p146
      %p153 = scmp.eq.s32.totalorder %s27, 1
      %p154 = por %p152, %p153
      %p155 = scmp.ne.s32.totalorder %s147, %s150
      %p156 = scmp.eq.s32.totalorder %s27, 0
      %p157 = por %p155, %p156
      %p158 = scmp.ne.s32.totalorder %s147, %s150
      %p159 = scmp.eq.s32.totalorder %s32, 1
      %p160 = por %p158, %p159
      %p161 = scmp.ne.s32.totalorder %s150, %s151
      %p162 = scmp.eq.s32.totalorder %s32, 0
      %p163 = por %p161, %p162
      %p164 = scmp.ne.s32.totalorder %s150, %s151
      %p165 = scmp.eq.s32.totalorder %s33, 1
      %p166 = por %p164, %p165
      %p168 = scmp.ne.s32.totalorder %s151, %s167
      %p169 = scmp.eq.s32.totalorder %s33, 0
      %p170 = por %p168, %p169
      %s171 = sadd.s32 %s34, 1
      %s172 = sadd.s32 %s46, 1
      %s173 = ssub.s32 %s35, %s42
      %s174 = ssub.s32 %s171, %s172
      %s175 = sor.u32 %s173, %s174
      %p176 = scmp.eq.s32.totalorder %s175, 0
      %s178 = sadd.s32 %s177, 1
      %s179 = scalar_select %p176, %s177, %s178
      %p182 = pneg %p176
      %p183 = scmp.eq.s32.totalorder %s27, 1
      %p184 = por %p182, %p183
      %p185 = scmp.ne.s32.totalorder %s177, %s180
      %p186 = scmp.eq.s32.totalorder %s27, 0
      %p187 = por %p185, %p186
      %p188 = scmp.ne.s32.totalorder %s177, %s180
      %p189 = scmp.eq.s32.totalorder %s32, 1
      %p190 = por %p188, %p189
      %p191 = scmp.ne.s32.totalorder %s180, %s181
      %p192 = scmp.eq.s32.totalorder %s32, 0
      %p193 = por %p191, %p192
      %p194 = scmp.ne.s32.totalorder %s180, %s181
      %p195 = scmp.eq.s32.totalorder %s33, 1
      %p196 = por %p194, %p195
      %p198 = scmp.ne.s32.totalorder %s181, %s197
      %p199 = scmp.eq.s32.totalorder %s33, 0
      %p200 = por %p198, %p199
      %s201 = ssub.s32 %s35, %s42
      %s202 = ssub.s32 %s34, %s46
      %s203 = sor.u32 %s201, %s202
      %p204 = scmp.eq.s32.totalorder %s203, 0
      %s206 = sadd.s32 %s205, 1
      %s207 = scalar_select %p204, %s205, %s206
      %p210 = pneg %p204
      %p211 = scmp.eq.s32.totalorder %s27, 1
      %p212 = por %p210, %p211
      %p213 = scmp.ne.s32.totalorder %s205, %s208
      %p214 = scmp.eq.s32.totalorder %s27, 0
      %p215 = por %p213, %p214
      %p216 = scmp.ne.s32.totalorder %s205, %s208
      %p217 = scmp.eq.s32.totalorder %s32, 1
      %p218 = por %p216, %p217
      %p219 = scmp.ne.s32.totalorder %s208, %s209
      %p220 = scmp.eq.s32.totalorder %s32, 0
      %p221 = por %p219, %p220
      %p222 = scmp.ne.s32.totalorder %s208, %s209
      %p223 = scmp.eq.s32.totalorder %s33, 1
      %p224 = por %p222, %p223
      %p226 = scmp.ne.s32.totalorder %s209, %s225
      %p227 = scmp.eq.s32.totalorder %s33, 0
      %p228 = por %p226, %p227
      %s229 = ssub.s32 %s35, %s42
      %s230 = ssub.s32 %s34, %s46
      %s231 = sor.u32 %s229, %s230
      %p232 = scmp.eq.s32.totalorder %s231, 0
      %s234 = sadd.s32 %s233, 1
      %s235 = scalar_select %p232, %s233, %s234
      %p238 = pneg %p232
      %p239 = scmp.eq.s32.totalorder %s27, 1
      %p240 = por %p238, %p239
      %p241 = scmp.ne.s32.totalorder %s233, %s236
      %p242 = scmp.eq.s32.totalorder %s27, 0
      %p243 = por %p241, %p242
      %p244 = scmp.ne.s32.totalorder %s233, %s236
      %p245 = scmp.eq.s32.totalorder %s32, 1
      %p246 = por %p244, %p245
      %p247 = scmp.ne.s32.totalorder %s236, %s237
      %p248 = scmp.eq.s32.totalorder %s32, 0
      %p249 = por %p247, %p248
      %p250 = scmp.ne.s32.totalorder %s236, %s237
      %p251 = scmp.eq.s32.totalorder %s33, 1
      %p252 = por %p250, %p251
      %p254 = scmp.ne.s32.totalorder %s237, %s253
      %p255 = scmp.eq.s32.totalorder %s33, 0
      %p256 = por %p254, %p255
      %p257 = scmp.le.s32.totalorder 1, %s27
      %p258 = scmp.lt.s32.totalorder %s27, 3
      %p259 = pnand %p257, %p258
      %p260 = pneg %p259
      // Predicated region
      $region9: #{tpu_custom_call.1} parent=5 // pred_check
        _
      $region10: #{tpu_custom_call.1} parent=5 // pred_check_branch
        %262 = sbr.rel (%p259) target = $region12
      $region11: #{tpu_custom_call.1} parent=5 // pred_region
        %s263 = ssub.s32 %s27, 1
        // Predicated region
        $region13: #{tpu_custom_call.1} parent=11 // pred_check
          %p264 = pneg %p91
        $region14: #{tpu_custom_call.1} parent=11 // pred_check_branch
          %266 = sbr.rel (%p264) target = $region16
        $region15: #{tpu_custom_call.1} parent=11 // pred_region
          %s268 = ssub.s32 256, 256
          %269 = vsyncadd [#allocation6], %s268
          %s270 = smul.addr %s36, 128
          %s271 = scalar_lea.hbm %s1, %s270
          %s272 = sshll.u32 [#allocation5], 4
          %s273 = int_to_ptr.vmem [resolvable:$true] %s272
          %278 = dma.hbm_to_vmem [thread:$0]  %s271, 256, %s273, [#allocation6], 128, 128, 8
        $region16: #{tpu_custom_call.1} parent=11 // pred_fallthru
          _
        // Predicated region
        $region17: #{tpu_custom_call.1} parent=11 // pred_check
          %p279 = pneg %p112
        $region18: #{tpu_custom_call.1} parent=11 // pred_check_branch
          %281 = sbr.rel (%p279) target = $region20
        $region19: #{tpu_custom_call.1} parent=11 // pred_region
          %s283 = ssub.s32 512, 512
          %284 = vsyncadd [#allocation6], %s283
          %s285 = sshll.u32 [#allocation7], 4
          %s286 = int_to_ptr.vmem [resolvable:$true] %s285
          %291 = dma.hbm_to_vmem [thread:$0]  %s2, 512, %s286, [#allocation6], 128, 128, 8
        $region20: #{tpu_custom_call.1} parent=11 // pred_fallthru
          _
        // Predicated region
        $region21: #{tpu_custom_call.1} parent=11 // pred_check
          %p292 = pneg %p133
        $region22: #{tpu_custom_call.1} parent=11 // pred_check_branch
          %294 = sbr.rel (%p292) target = $region24
        $region23: #{tpu_custom_call.1} parent=11 // pred_region
          _
        $region24: #{tpu_custom_call.1} parent=11 // pred_fallthru
          _
      $region12: #{tpu_custom_call.1} parent=5 // pred_fallthru
        _
      %p295 = scmp.lt.s32.totalorder %s27, 2
      // Predicated region
      $region25: #{tpu_custom_call.1} parent=5 // pred_check
        %p296 = pneg %p295
      $region26: #{tpu_custom_call.1} parent=5 // pred_check_branch
        %298 = sbr.rel (%p296) target = $region28
      $region27: #{tpu_custom_call.1} parent=5 // pred_region
        // Predicated region
        $region29: #{tpu_custom_call.1} parent=27 // pred_check
          %p299 = pneg %p59
        $region30: #{tpu_custom_call.1} parent=27 // pred_check_branch
          %301 = sbr.rel (%p299) target = $region32
        $region31: #{tpu_custom_call.1} parent=27 // pred_region
          %s302 = sand.u32 %s49, 1
          %s303 = scalar_lea.sflag [#allocation3], %s302
          %s304 = sand.u32 %s49, 1
          %s305 = smul.addr %s304, 2
          %s306 = scalar_lea.vmem [#allocation2], %s305
          %s308 = ssub.s32 32, 32
          %309 = vsyncadd %s303, %s308
          %s310 = smul.addr %s35, 32
          %s311 = scalar_lea.hbm %s0, %s310
          %s313 = sshll.u32 %s306, 4
          %s314 = int_to_ptr.vmem [resolvable:$true] %s313
          %316 = dma.hbm_to_vmem [thread:$0]  %s311, 32, %s314, %s303
        $region32: #{tpu_custom_call.1} parent=27 // pred_fallthru
          _
        // Predicated region
        $region33: #{tpu_custom_call.1} parent=27 // pred_check
          %p317 = pneg %p157
        $region34: #{tpu_custom_call.1} parent=27 // pred_check_branch
          %319 = sbr.rel (%p317) target = $region36
        $region35: #{tpu_custom_call.1} parent=27 // pred_region
          %s320 = sand.u32 %s27, 1
          %s321 = scalar_lea.sflag [#allocation9], %s320
          %s322 = sand.u32 %s147, 1
          %s323 = smul.addr %s322, 8
          %s324 = scalar_lea.vmem [#allocation8], %s323
          %s325 = sadd.s32 %s34, 1
          %s327 = ssub.s32 128, 128
          %328 = vsyncadd %s321, %s327
          %s329 = smul.addr %s35, 2
          %s330 = sadd.s32 %s325, %s329
          %s331 = smul.addr %s330, 128
          %s332 = scalar_lea.hbm %s4, %s331
          %s334 = sshll.u32 %s324, 4
          %s335 = int_to_ptr.vmem [resolvable:$true] %s334
          %337 = dma.hbm_to_vmem [thread:$0]  %s332, 128, %s335, %s321
        $region36: #{tpu_custom_call.1} parent=27 // pred_fallthru
          _
        // Predicated region
        $region37: #{tpu_custom_call.1} parent=27 // pred_check
          %p338 = pneg %p187
        $region38: #{tpu_custom_call.1} parent=27 // pred_check_branch
          %340 = sbr.rel (%p338) target = $region40
        $region39: #{tpu_custom_call.1} parent=27 // pred_region
          %s341 = sand.u32 %s27, 1
          %s342 = scalar_lea.sflag [#allocation9], %s341
          %s343 = sand.u32 %s177, 1
          %s344 = smul.addr %s343, 8
          %s345 = scalar_lea.vmem [#allocation10], %s344
          %s346 = sadd.s32 %s34, 1
          %s348 = ssub.s32 128, 128
          %349 = vsyncadd %s342, %s348
          %s350 = smul.addr %s35, 2
          %s351 = sadd.s32 %s346, %s350
          %s352 = smul.addr %s351, 128
          %s353 = scalar_lea.hbm %s5, %s352
          %s355 = sshll.u32 %s345, 4
          %s356 = int_to_ptr.vmem [resolvable:$true] %s355
          %358 = dma.hbm_to_vmem [thread:$0]  %s353, 128, %s356, %s342
        $region40: #{tpu_custom_call.1} parent=27 // pred_fallthru
          _
      $region28: #{tpu_custom_call.1} parent=5 // pred_fallthru
        _
      %p359 = scmp.le.s32.totalorder 1, %s27
      %p360 = scmp.lt.s32.totalorder %s27, 3
      %p361 = pnand %p359, %p360
      %p362 = pneg %p361
      // Predicated region
      $region41: #{tpu_custom_call.1} parent=5 // pred_check
        _
      $region42: #{tpu_custom_call.1} parent=5 // pred_check_branch
        %364 = sbr.rel (%p361) target = $region44
      $region43: #{tpu_custom_call.1} parent=5 // pred_region
        %s365 = ssub.s32 %s27, 1
        %s366 = sand.u32 %s52, 1
        %s367 = scalar_lea.sflag [#allocation3], %s366
        %s368 = sand.u32 %s52, 1
        %s369 = smul.addr %s368, 2
        %s370 = scalar_lea.vmem [#allocation2], %s369
        // Predicated region
        $region45: #{tpu_custom_call.1} parent=43 // pred_check
          %p371 = pneg %p65
        $region46: #{tpu_custom_call.1} parent=43 // pred_check_branch
          %373 = sbr.rel (%p371) target = $region48
        $region47: #{tpu_custom_call.1} parent=43 // pred_region
          %374 = dma.done %s367, 32
        $region48: #{tpu_custom_call.1} parent=43 // pred_fallthru
          _
        // Predicated region
        $region49: #{tpu_custom_call.1} parent=43 // pred_check
          %p375 = pneg %p91
        $region50: #{tpu_custom_call.1} parent=43 // pred_check_branch
          %377 = sbr.rel (%p375) target = $region52
        $region51: #{tpu_custom_call.1} parent=43 // pred_region
          %378 = dma.done [#allocation6], 256
        $region52: #{tpu_custom_call.1} parent=43 // pred_fallthru
          _
        // Predicated region
        $region53: #{tpu_custom_call.1} parent=43 // pred_check
          %p379 = pneg %p112
        $region54: #{tpu_custom_call.1} parent=43 // pred_check_branch
          %381 = sbr.rel (%p379) target = $region56
        $region55: #{tpu_custom_call.1} parent=43 // pred_region
          %382 = dma.done [#allocation6], 512
        $region56: #{tpu_custom_call.1} parent=43 // pred_fallthru
          _
        %s383 = sand.u32 %s32, 1
        %s384 = scalar_lea.sflag [#allocation9], %s383
        %s385 = sand.u32 %s150, 1
        %s386 = smul.addr %s385, 8
        %s387 = scalar_lea.vmem [#allocation8], %s386
        // Predicated region
        $region57: #{tpu_custom_call.1} parent=43 // pred_check
          %p388 = pneg %p163
        $region58: #{tpu_custom_call.1} parent=43 // pred_check_branch
          %390 = sbr.rel (%p388) target = $region60
        $region59: #{tpu_custom_call.1} parent=43 // pred_region
          %391 = dma.done %s384, 128
        $region60: #{tpu_custom_call.1} parent=43 // pred_fallthru
          _
        %s392 = sand.u32 %s32, 1
        %s393 = scalar_lea.sflag [#allocation9], %s392
        %s394 = sand.u32 %s180, 1
        %s395 = smul.addr %s394, 8
        %s396 = scalar_lea.vmem [#allocation10], %s395
        // Predicated region
        $region61: #{tpu_custom_call.1} parent=43 // pred_check
          %p397 = pneg %p193
        $region62: #{tpu_custom_call.1} parent=43 // pred_check_branch
          %399 = sbr.rel (%p397) target = $region64
        $region63: #{tpu_custom_call.1} parent=43 // pred_region
          %400 = dma.done %s393, 128
        $region64: #{tpu_custom_call.1} parent=43 // pred_fallthru
          _
        %s401 = sand.u32 %s52, 1
        %s402 = scalar_lea.sflag [#allocation3], %s401
        %s403 = sand.u32 %s52, 1
        %s404 = smul.addr %s403, 2
        %s405 = scalar_lea.vmem [#allocation2], %s404
        %p406 = pneg %p65
        %p407 = pneg %p62
        %p408 = pneg %p91
        %p409 = pneg %p88
        %p410 = pneg %p112
        %p411 = pneg %p109
        %p412 = pneg %p133
        %p413 = pneg %p130
        %s414 = sand.u32 %s32, 1
        %s415 = scalar_lea.sflag [#allocation9], %s414
        %s416 = sand.u32 %s150, 1
        %s417 = smul.addr %s416, 8
        %s418 = scalar_lea.vmem [#allocation8], %s417
        %p419 = pneg %p163
        %p420 = pneg %p160
        %s421 = sand.u32 %s32, 1
        %s422 = scalar_lea.sflag [#allocation9], %s421
        %s423 = sand.u32 %s180, 1
        %s424 = smul.addr %s423, 8
        %s425 = scalar_lea.vmem [#allocation10], %s424
        %p426 = pneg %p193
        %p427 = pneg %p190
        %p428 = pneg %p221
        %p429 = pneg %p218
        %s430 = sand.u32 %s208, 1
        %s431 = scalar_lea.sflag [#allocation4], %s430
        %s432 = sand.u32 %s208, 1
        %s433 = smul.addr %s432, 8
        %s434 = scalar_lea.vmem [#allocation11], %s433
        %p435 = pneg %p249
        %p436 = pneg %p246
        %s437 = sand.u32 %s236, 1
        %s438 = scalar_lea.sflag [#allocation13], %s437
        %s439 = sand.u32 %s236, 1
        %s440 = smul.addr %s439, 8
        %s441 = scalar_lea.vmem [#allocation12], %s440
        %s442 = sadd.s32 %s36, 1
        %s443 = sadd.s32 %s36, 1
        %v444 = vld [vmem:[%s370] sm:$0x3]
        %v445 = vld [vmem:[#allocation7] sm:$0xff]
        %v446 = vld [vmem:[#allocation7 + $0x8] sm:$0xff]
        %v447 = vld [vmem:[#allocation7 + $0x10] sm:$0xff]
        %v448 = vld [vmem:[#allocation7 + $0x18] sm:$0xff]
        %v449 = vld [vmem:[%s3] sm:$0x1]
        %v450 = vld [vmem:[#allocation5] sm:$0xff]
        %v451 = vlaneseq
        %v452 = vshrl.u32 %v451, 7
        %v453 = vsub.s32 0, %v452
        %v454 = vrot.slane %v444, %v453
        %v455 = vmul.f32 %v454, %v450
        %v456 = vadd.f32 %v455, 0.0
        %v457 = vld [vmem:[%s387] sm:$0xff]
        %v458 = vadd.f32 %v457, 0.0
        %s459 = scalar_lea.vmem [#allocation5], 8
        %v460 = vld [vmem:[%s459] sm:$0xff]
        %v461 = vlaneseq
        %v462 = vshrl.u32 %v461, 7
        %v463 = vsub.s32 1, %v462
        %v464 = vrot.slane %v444, %v463
        %v465 = vmul.f32 %v464, %v460
        %v466 = vadd.f32 %v456, %v465
        %v467 = vld [vmem:[%s396] sm:$0xff]
        %v468 = vadd.f32 %v458, %v467
        %v470 = vlaneseq
        %v471 = vshrl.u32 %v470, 7
        %v472 = vsub.s32 0, %v471
        %v473 = vrot.slane %v449, %v472
        %vm475 = vcmask 261120
        %v477 = vsel %vm475, %v466, 0
        %479 = vmatprep.subr.mxu0 0.0
        %480 = vmatpush1.msra.mxu0 0.0
        %481 = vmatprep.subr.mxu0 0.0
        %482 = vmatpush1.msra.mxu0 0.0
        %483 = vmatprep.subr.mxu0 0.0
        %484 = vmatpush1.msra.mxu0 0.0
        %485 = vmatprep.subr.mxu0 0.0
        %486 = vmatpush1.msra.mxu0 0.0
        %487 = vmatprep.subr.mxu0 0.0
        %488 = vmatpush1.msra.mxu0 0.0
        %489 = vmatprep.subr.mxu0 0.0
        %490 = vmatpush1.msra.mxu0 0.0
        %491 = vmatprep.subr.mxu0 0.0
        %492 = vmatpush1.msra.mxu0 0.0
        %493 = vmatprep.subr.mxu0 0.0
        %494 = vmatpush1.msra.mxu0 0.0
        %495 = vmatprep.subr.mxu0 0.0
        %496 = vmatpush1.msra.mxu0 0.0
        %497 = vmatprep.subr.mxu0 0.0
        %498 = vmatpush1.msra.mxu0 0.0
        %499 = vmatprep.subr.mxu0 0.0
        %500 = vmatpush1.msra.mxu0 0.0
        %501 = vmatprep.subr.mxu0 0.0
        %502 = vmatpush1.msra.mxu0 0.0
        %503 = vmatprep.subr.mxu0 0.0
        %504 = vmatpush1.msra.mxu0 %v448
        %505 = vmatprep.subr.mxu0 0.0
        %506 = vmatpush1.msra.mxu0 %v447
        %507 = vmatprep.subr.mxu0 0.0
        %508 = vmatpush1.msra.mxu0 %v446
        %509 = vmatprep.subr.mxu0 0.0
        %510 = vmatpush1.msra.mxu0 %v445
        %511 = vmatprep.subr.mxu0 0.0
        %512 = vmatpush2.msra.mxu0 0.0
        %513 = vmatprep.subr.mxu0 0.0
        %514 = vmatpush2.msra.mxu0 0.0
        %515 = vmatprep.subr.mxu0 0.0
        %516 = vmatpush2.msra.mxu0 0.0
        %517 = vmatprep.subr.mxu0 0.0
        %518 = vmatpush2.msra.mxu0 0.0
        %519 = vmatprep.subr.mxu0 0.0
        %520 = vmatpush2.msra.mxu0 0.0
        %521 = vmatprep.subr.mxu0 0.0
        %522 = vmatpush2.msra.mxu0 0.0
        %523 = vmatprep.subr.mxu0 0.0
        %524 = vmatpush2.msra.mxu0 0.0
        %525 = vmatprep.subr.mxu0 0.0
        %526 = vmatpush2.msra.mxu0 0.0
        %527 = vmatprep.subr.mxu0 0.0
        %528 = vmatpush2.msra.mxu0 0.0
        %529 = vmatprep.subr.mxu0 0.0
        %530 = vmatpush2.msra.mxu0 0.0
        %531 = vmatprep.subr.mxu0 0.0
        %532 = vmatpush2.msra.mxu0 0.0
        %533 = vmatprep.subr.mxu0 0.0
        %534 = vmatpush2.msra.mxu0 0.0
        %535 = vmatprep.subr.mxu0 0.0
        %536 = vmatpush2.msra.mxu0 0.0
        %537 = vmatprep.subr.mxu0 0.0
        %538 = vmatpush2.msra.mxu0 0.0
        %539 = vmatprep.subr.mxu0 0.0
        %540 = vmatpush2.msra.mxu0 0.0
        %541 = vmatprep.subr.mxu0 0.0
        %542 = vmatpush2.msra.mxu0 0.0
        %543 = vmatprep.mubr.f32.mxu0 0.0
        %544 = vmatmul.mubr.f32.gmra.mxu0 %v477
        %v545 = vpop.f32.mrf.mxu0
        %v546 = vadd.f32 %v473, %v545
        %v547 = vpop.f32.mrf.mxu0
        %548 = vdwg.mxu0
        %v550 = vsel %vm475, %v468, 0
        %552 = vmatprep.subr.mxu0 0.0
        %553 = vmatpush1.msra.mxu0 0.0
        %554 = vmatprep.subr.mxu0 0.0
        %555 = vmatpush1.msra.mxu0 0.0
        %556 = vmatprep.subr.mxu0 0.0
        %557 = vmatpush1.msra.mxu0 0.0
        %558 = vmatprep.subr.mxu0 0.0
        %559 = vmatpush1.msra.mxu0 0.0
        %560 = vmatprep.subr.mxu0 0.0
        %561 = vmatpush1.msra.mxu0 0.0
        %562 = vmatprep.subr.mxu0 0.0
        %563 = vmatpush1.msra.mxu0 0.0
        %564 = vmatprep.subr.mxu0 0.0
        %565 = vmatpush1.msra.mxu0 0.0
        %566 = vmatprep.subr.mxu0 0.0
        %567 = vmatpush1.msra.mxu0 0.0
        %568 = vmatprep.subr.mxu0 0.0
        %569 = vmatpush1.msra.mxu0 0.0
        %570 = vmatprep.subr.mxu0 0.0
        %571 = vmatpush1.msra.mxu0 0.0
        %572 = vmatprep.subr.mxu0 0.0
        %573 = vmatpush1.msra.mxu0 0.0
        %574 = vmatprep.subr.mxu0 0.0
        %575 = vmatpush1.msra.mxu0 0.0
        %576 = vmatprep.subr.mxu0 0.0
        %577 = vmatpush1.msra.mxu0 %v448
        %578 = vmatprep.subr.mxu0 0.0
        %579 = vmatpush1.msra.mxu0 %v447
        %580 = vmatprep.subr.mxu0 0.0
        %581 = vmatpush1.msra.mxu0 %v446
        %582 = vmatprep.subr.mxu0 0.0
        %583 = vmatpush1.msra.mxu0 %v445
        %584 = vmatprep.subr.mxu0 0.0
        %585 = vmatpush2.msra.mxu0 0.0
        %586 = vmatprep.subr.mxu0 0.0
        %587 = vmatpush2.msra.mxu0 0.0
        %588 = vmatprep.subr.mxu0 0.0
        %589 = vmatpush2.msra.mxu0 0.0
        %590 = vmatprep.subr.mxu0 0.0
        %591 = vmatpush2.msra.mxu0 0.0
        %592 = vmatprep.subr.mxu0 0.0
        %593 = vmatpush2.msra.mxu0 0.0
        %594 = vmatprep.subr.mxu0 0.0
        %595 = vmatpush2.msra.mxu0 0.0
        %596 = vmatprep.subr.mxu0 0.0
        %597 = vmatpush2.msra.mxu0 0.0
        %598 = vmatprep.subr.mxu0 0.0
        %599 = vmatpush2.msra.mxu0 0.0
        %600 = vmatprep.subr.mxu0 0.0
        %601 = vmatpush2.msra.mxu0 0.0
        %602 = vmatprep.subr.mxu0 0.0
        %603 = vmatpush2.msra.mxu0 0.0
        %604 = vmatprep.subr.mxu0 0.0
        %605 = vmatpush2.msra.mxu0 0.0
        %606 = vmatprep.subr.mxu0 0.0
        %607 = vmatpush2.msra.mxu0 0.0
        %608 = vmatprep.subr.mxu0 0.0
        %609 = vmatpush2.msra.mxu0 0.0
        %610 = vmatprep.subr.mxu0 0.0
        %611 = vmatpush2.msra.mxu0 0.0
        %612 = vmatprep.subr.mxu0 0.0
        %613 = vmatpush2.msra.mxu0 0.0
        %614 = vmatprep.subr.mxu0 0.0
        %615 = vmatpush2.msra.mxu0 0.0
        %616 = vmatprep.mubr.f32.mxu0 0.0
        %617 = vmatmul.mubr.f32.gmra.mxu0 %v550
        %v618 = vpop.f32.mrf.mxu0
        %v619 = vadd.f32 %v473, %v618
        %v620 = vpop.f32.mrf.mxu0
        %621 = vdwg.mxu0
        %622 = vst [vmem:[%s434] sm:$0xff] %v546
        %623 = vst [vmem:[%s441] sm:$0xff] %v619
        %s624 = sand.u32 %s208, 1
        %s625 = scalar_lea.sflag [#allocation4], %s624
        %s626 = sand.u32 %s208, 1
        %s627 = smul.addr %s626, 8
        %s628 = scalar_lea.vmem [#allocation11], %s627
        %s629 = sand.u32 %s236, 1
        %s630 = scalar_lea.sflag [#allocation13], %s629
        %s631 = sand.u32 %s236, 1
        %s632 = smul.addr %s631, 8
        %s633 = scalar_lea.vmem [#allocation12], %s632
        // Predicated region
        $region65: #{tpu_custom_call.1} parent=43 // pred_check
          %p634 = pneg %p218
        $region66: #{tpu_custom_call.1} parent=43 // pred_check_branch
          %636 = sbr.rel (%p634) target = $region68
        $region67: #{tpu_custom_call.1} parent=43 // pred_region
          %s638 = ssub.s32 128, 128
          %639 = vsyncadd %s625, %s638
          %s640 = sadd.s32 %s36, %s37
          %s641 = smul.addr %s640, 128
          %s642 = scalar_lea.hbm %s6, %s641
          %s644 = sshll.u32 %s628, 4
          %s645 = int_to_ptr.vmem [resolvable:$true] %s644
          %647 = dma.vmem_to_hbm [thread:$0]  %s645, 128, %s642, %s625
        $region68: #{tpu_custom_call.1} parent=43 // pred_fallthru
          _
        // Predicated region
        $region69: #{tpu_custom_call.1} parent=43 // pred_check
          %p648 = pneg %p246
        $region70: #{tpu_custom_call.1} parent=43 // pred_check_branch
          %650 = sbr.rel (%p648) target = $region72
        $region71: #{tpu_custom_call.1} parent=43 // pred_region
          %s652 = ssub.s32 128, 128
          %653 = vsyncadd %s630, %s652
          %s654 = sadd.s32 %s36, %s37
          %s655 = smul.addr %s654, 128
          %s656 = scalar_lea.hbm %s7, %s655
          %s658 = sshll.u32 %s633, 4
          %s659 = int_to_ptr.vmem [resolvable:$true] %s658
          %661 = dma.vmem_to_hbm [thread:$0]  %s659, 128, %s656, %s630
        $region72: #{tpu_custom_call.1} parent=43 // pred_fallthru
          _
      $region44: #{tpu_custom_call.1} parent=5 // pred_fallthru
        _
      %p662 = scmp.le.s32.totalorder 2, %s27
      // Predicated region
      $region73: #{tpu_custom_call.1} parent=5 // pred_check
        %p663 = pneg %p662
      $region74: #{tpu_custom_call.1} parent=5 // pred_check_branch
        %665 = sbr.rel (%p663) target = $region76
      $region75: #{tpu_custom_call.1} parent=5 // pred_region
        %s666 = ssub.s32 %s27, 2
        // Predicated region
        $region77: #{tpu_custom_call.1} parent=75 // pred_check
          %p667 = pneg %p224
        $region78: #{tpu_custom_call.1} parent=75 // pred_check_branch
          %669 = sbr.rel (%p667) target = $region80
        $region79: #{tpu_custom_call.1} parent=75 // pred_region
          %s670 = sand.u32 %s209, 1
          %s671 = scalar_lea.sflag [#allocation4], %s670
          %s672 = sand.u32 %s209, 1
          %s673 = smul.addr %s672, 8
          %s674 = scalar_lea.vmem [#allocation11], %s673
          %675 = dma.done %s671, 128
        $region80: #{tpu_custom_call.1} parent=75 // pred_fallthru
          _
        // Predicated region
        $region81: #{tpu_custom_call.1} parent=75 // pred_check
          %p676 = pneg %p252
        $region82: #{tpu_custom_call.1} parent=75 // pred_check_branch
          %678 = sbr.rel (%p676) target = $region84
        $region83: #{tpu_custom_call.1} parent=75 // pred_region
          %s679 = sand.u32 %s237, 1
          %s680 = scalar_lea.sflag [#allocation13], %s679
          %s681 = sand.u32 %s237, 1
          %s682 = smul.addr %s681, 8
          %s683 = scalar_lea.vmem [#allocation12], %s682
          %684 = dma.done %s680, 128
        $region84: #{tpu_custom_call.1} parent=75 // pred_fallthru
          _
      $region76: #{tpu_custom_call.1} parent=5 // pred_fallthru
        _
    $region6: #{tpu_custom_call.1} parent=1 // loop_footer
      %s31 = sadd.s32 1, %s27
    $region7: #{tpu_custom_call.1} parent=1 // loop_footer_branch
      %26 = sbr.rel target = $region3
    $region8: #{tpu_custom_call.1} parent=1 // loop_exit
      _
    %685 = vsyncpa [#allocation3], 1
    %s686 = scalar_lea.sflag [#allocation3], 1
    %687 = vsyncpa %s686, 1
    %688 = vsyncpa [#allocation6], 1
    %689 = vsyncpa [#allocation9], 1
    %s690 = scalar_lea.sflag [#allocation9], 1
    %691 = vsyncpa %s690, 1
    %692 = vsyncpa [#allocation4], 1
    %s693 = scalar_lea.sflag [#allocation4], 1
    %694 = vsyncpa %s693, 1
    %695 = vsyncpa [#allocation13], 1
    %s696 = scalar_lea.sflag [#allocation13], 1
    %697 = vsyncpa %s696, 1

</llo_original>
